<compile_context>
chip_gen: v7x
topology: tpu7x:2x2x1
jax: 0.10.0
libtpu: 0.0.40
codegen_flags: <defaults>
</compile_context>

<pallas_src>
import jax
import jax.numpy as jnp
from jax.experimental import pallas as pl
from jax.experimental.pallas import tpu as pltpu


# ---------------------------------------------------------------------------
# Fused kernel: mul_IK projection + V projection + gate + final Linear.
# Layout: features on sublanes, tokens on lanes ("transposed"), so the
# (Dout, M) output store is lane-dense.
# ---------------------------------------------------------------------------
def _fused_attention_kernel(xpsum_ref, xpt_ref, wk_ref, bk_ref, wv_ref, bv_ref,
                            wl_ref, bl_ref, out_ref):
    n_tok = xpsum_ref.shape[1]          # N  (tokens per image)
    m_tok = xpt_ref.shape[1]            # M = B * N  (all tokens)
    nb = m_tok // n_tok                 # batch size (static python int)

    # mul_IK^T : (D, N) — single MXU matmul over the batch-summed input.
    # (bk_ref is pre-scaled by B in the wrapper: sum_b bias == B * bk.)
    mulik = (jnp.dot(wk_ref[...], xpsum_ref[...],
                     preferred_element_type=jnp.float32) + bk_ref[...])

    # V^T : (D, M) — one MXU matmul over all B*N tokens (no per-batch loop).
    v = (jnp.dot(wv_ref[...], xpt_ref[...],
                 preferred_element_type=jnp.float32) + bv_ref[...])

    # Broadcast mul_IK across the batch along the lane (token) axis.
    if nb > 1:
        mulik_b = jnp.concatenate([mulik] * nb, axis=1)       # (D, M)
    else:
        mulik_b = mulik
    feat = mulik_b * v                                         # (D, M), VPU

    # Final Linear: out^T = Wl @ feat + bl  -> (Dout, M), lane-dense store.
    out_ref[...] = (jnp.dot(wl_ref[...], feat,
                            preferred_element_type=jnp.float32) + bl_ref[...])


def mobilevitv2_attention(x, params, patchsize=1, output_feature_size=False):
    B, C, H, W = x.shape
    p = patchsize
    assert H % p == 0 and W % p == 0
    Hp, Wp = H // p, W // p
    N = Hp * Wp
    M = B * N
    D = params["wk"].shape[0]           # mid_dim == out_feature
    P = C * p * p

    # --- glue: non-overlapping p x p patches -> tokens.  Feature order
    #     (C, kh, kw) matches the Conv2d(kernel=stride=p) weight layout
    #     (D, C, kh, kw), so the conv becomes a plain matmul. ---
    xp = x.reshape(B, C, Hp, p, Wp, p).transpose(0, 2, 4, 1, 3, 5)
    xp = xp.reshape(B, N, P).astype(jnp.float32)

    # Tokens-on-lanes layout for lane-dense compute and stores.
    xp_t = xp.reshape(M, P).T                     # (P, M)
    xpsum_t = xp.sum(axis=0).T                    # (P, N)  cross-batch sum

    wk = params["wk"].reshape(D, P).astype(jnp.float32)            # (D, P)
    wv = params["wv"].reshape(D, P).astype(jnp.float32)            # (D, P)
    wl = params["wl"].astype(jnp.float32)                          # (Dout, D)
    Dout = wl.shape[0]
    bk = (B * params["bk"]).reshape(D, 1).astype(jnp.float32)      # sum_b bk
    bv = params["bv"].reshape(D, 1).astype(jnp.float32)
    bl = params["bl"].reshape(Dout, 1).astype(jnp.float32)
    # params["wq"] / ["bq"] / ["ws"] / ["bs"] feed only the softmax-over-1
    # score path, which is identically 1.0 — eliminated (see header comment).

    def full(shp):
        return pl.BlockSpec(shp, lambda i: (0, 0))

    out_t = pl.pallas_call(
        _fused_attention_kernel,
        out_shape=jax.ShapeDtypeStruct((Dout, M), jnp.float32),
        grid_spec=pltpu.PrefetchScalarGridSpec(
            num_scalar_prefetch=0,
            grid=(1,),
            in_specs=[
                full((P, N)),                 # xpsum^T  (batch-summed input)
                full((P, M)),                 # xp^T     (all tokens)
                full((D, P)), full((D, 1)),   # K projection (w, B*bias)
                full((D, P)), full((D, 1)),   # V projection
                full((Dout, D)), full((Dout, 1)),   # final Linear
            ],
            out_specs=full((Dout, M)),
        ),
        compiler_params=pltpu.CompilerParams(
            dimension_semantics=("arbitrary",)),
    )(xpsum_t, xp_t, wk, bk, wv, bv, wl, bl)

    # Back to the PyTorch token-major layout (B, N, Dout).
    out = out_t.T.reshape(B, N, Dout)

    out_shape_tuple = (B, D, Hp, Wp)
    if output_feature_size:
        # The original PyTorch module does a raw `x.reshape(shape)` on the
        # contiguous (B, N, D) result (no permute); a row-major jnp reshape
        # reproduces exactly that element order.
        return out.reshape(out_shape_tuple)
    return out, out_shape_tuple


# ---------------------------------------------------------------------------
# Deterministic parameter init (shapes dictated by the PyTorch __init__)
# ---------------------------------------------------------------------------
def init_params(key, in_feature, out_feature, patchsize):
    C, D, p = in_feature, out_feature, patchsize
    keys = jax.random.split(key, 10)
    P = C * p * p
    sc_conv = 1.0 / jnp.sqrt(jnp.float32(P))
    sc_lin = 1.0 / jnp.sqrt(jnp.float32(D))
    return {
        "wq": sc_conv * jax.random.normal(keys[0], (D, C, p, p), jnp.float32),
        "bq": sc_conv * jax.random.normal(keys[1], (D,), jnp.float32),
        "wk": sc_conv * jax.random.normal(keys[2], (D, C, p, p), jnp.float32),
        "bk": sc_conv * jax.random.normal(keys[3], (D,), jnp.float32),
        "wv": sc_conv * jax.random.normal(keys[4], (D, C, p, p), jnp.float32),
        "bv": sc_conv * jax.random.normal(keys[5], (D,), jnp.float32),
        "ws": sc_lin * jax.random.normal(keys[6], (1, D), jnp.float32),   # Linear(D, 1)
        "bs": sc_lin * jax.random.normal(keys[7], (1,), jnp.float32),
        "wl": sc_lin * jax.random.normal(keys[8], (D, D), jnp.float32),   # Linear(D, D)
        "bl": sc_lin * jax.random.normal(keys[9], (D,), jnp.float32),
    }


# ---------------------------------------------------------------------------
# Pure-JAX reference (mirrors the PyTorch forward op-for-op, INCLUDING the
# Q projection / score Linear / softmax, to verify the elimination is exact)
# ---------------------------------------------------------------------------
def reference_forward(x, params, p):
    B, C, H, W = x.shape
    D = params["wk"].shape[0]
    Hp, Wp = H // p, W // p
    N = Hp * Wp

    def conv(w, b):
        y = jax.lax.conv_general_dilated(
            x.astype(jnp.float32), w, window_strides=(p, p), padding="VALID",
            dimension_numbers=("NCHW", "OIHW", "NCHW"))
        return y + b[None, :, None, None]

    def to_tokens(y):
        return y.reshape(B, D, N).transpose(0, 2, 1)         # flatten(-2).permute

    K = to_tokens(conv(params["wk"], params["bk"]))
    V = to_tokens(conv(params["wv"], params["bv"]))
    I = to_tokens(conv(params["wq"], params["bq"]))
    s = I @ params["ws"].T + params["bs"]                     # (B, N, 1)
    score = jax.nn.softmax(s, axis=-1)                        # identically 1.0
    mul_ik = (score * K).sum(axis=0)                          # (N, D)
    feat = mul_ik * V                                         # (B, N, D)
    return feat @ params["wl"].T + params["bl"]               # (B, N, D)


if __name__ == "__main__":
    key = jax.random.PRNGKey(0)
    kx, kp = jax.random.split(key)

    B, C, H, W = 2, 4, 16, 16
    out_feature = 32
    patchsize = 2

    x = jax.random.normal(kx, (B, C, H, W), dtype=jnp.float32)
    params = init_params(kp, C, out_feature, patchsize)

    out, shape = mobilevitv2_attention(x, params, patchsize=patchsize)
    out = jax.block_until_ready(out)

    ref = reference_forward(x, params, patchsize)
    assert out.shape == ref.shape, (out.shape, ref.shape)
    assert shape == (B, out_feature, H // patchsize, W // patchsize), shape
    err = float(jnp.max(jnp.abs(out - ref)))
    assert jnp.allclose(out, ref, rtol=1e-4, atol=1e-4), f"max abs err {err}"

    # Also exercise the output_feature_size=True path (raw reshape, as PyTorch).
    out_fs = mobilevitv2_attention(x, params, patchsize=patchsize,
                                   output_feature_size=True)
    out_fs = jax.block_until_ready(out_fs)
    assert out_fs.shape == (B, out_feature, H // patchsize, W // patchsize)

    print("KERNEL_OK")
</pallas_src>

<mosaic_0001>
module attributes {stable_mosaic.version = 11 : i64} {
  func.func @_fused_attention_kernel(%arg0: i32, %arg1: memref<16x64xf32, #tpu.memory_space<vmem>>, %arg2: memref<16x128xf32, #tpu.memory_space<vmem>>, %arg3: memref<32x16xf32, #tpu.memory_space<vmem>>, %arg4: memref<32x1xf32, #tpu.memory_space<vmem>>, %arg5: memref<32x16xf32, #tpu.memory_space<vmem>>, %arg6: memref<32x1xf32, #tpu.memory_space<vmem>>, %arg7: memref<32x32xf32, #tpu.memory_space<vmem>>, %arg8: memref<32x1xf32, #tpu.memory_space<vmem>>, %arg9: memref<32x128xf32, #tpu.memory_space<vmem>>) attributes {dimension_semantics = [#tpu.dimension_semantics<arbitrary>], iteration_bounds = array<i64: 1>, scalar_prefetch = 0 : i64, scratch_operands = 0 : i64, tpu.core_type = #tpu.core_type<tc>, window_params = [{pipeline_mode = #tpu.pipeline_mode<synchronous>, transform_indices = @transform_0, window_bounds = array<i64: 16, 64>}, {pipeline_mode = #tpu.pipeline_mode<synchronous>, transform_indices = @transform_1, window_bounds = array<i64: 16, 128>}, {pipeline_mode = #tpu.pipeline_mode<synchronous>, transform_indices = @transform_2, window_bounds = array<i64: 32, 16>}, {pipeline_mode = #tpu.pipeline_mode<synchronous>, transform_indices = @transform_3, window_bounds = array<i64: 32, 1>}, {pipeline_mode = #tpu.pipeline_mode<synchronous>, transform_indices = @transform_4, window_bounds = array<i64: 32, 16>}, {pipeline_mode = #tpu.pipeline_mode<synchronous>, transform_indices = @transform_5, window_bounds = array<i64: 32, 1>}, {pipeline_mode = #tpu.pipeline_mode<synchronous>, transform_indices = @transform_6, window_bounds = array<i64: 32, 32>}, {pipeline_mode = #tpu.pipeline_mode<synchronous>, transform_indices = @transform_7, window_bounds = array<i64: 32, 1>}, {pipeline_mode = #tpu.pipeline_mode<synchronous>, transform_indices = @transform_8, window_bounds = array<i64: 32, 128>}]} {
    %c0 = arith.constant 0 : index
    %c0_0 = arith.constant 0 : index
    %0 = vector.load %arg3[%c0, %c0_0] : memref<32x16xf32, #tpu.memory_space<vmem>>, vector<32x16xf32>
    %c0_1 = arith.constant 0 : index
    %c0_2 = arith.constant 0 : index
    %1 = vector.load %arg1[%c0_1, %c0_2] : memref<16x64xf32, #tpu.memory_space<vmem>>, vector<16x64xf32>
    %cst = arith.constant dense<0.000000e+00> : vector<32x64xf32>
    %2 = tpu.matmul %0, %1, %cst {dimension_numbers = #tpu.dot_dimension_numbers<[1], [0], [0], [1], [0, 0, 1, 1], [], []>} : vector<32x16xf32>, vector<16x64xf32>, vector<32x64xf32> -> vector<32x64xf32>
    %c0_3 = arith.constant 0 : index
    %c0_4 = arith.constant 0 : index
    %3 = vector.load %arg4[%c0_3, %c0_4] : memref<32x1xf32, #tpu.memory_space<vmem>>, vector<32x1xf32>
    %4 = vector.broadcast %3 : vector<32x1xf32> to vector<32x64xf32>
    %5 = arith.addf %2, %4 : vector<32x64xf32>
    %c0_5 = arith.constant 0 : index
    %c0_6 = arith.constant 0 : index
    %6 = vector.load %arg5[%c0_5, %c0_6] : memref<32x16xf32, #tpu.memory_space<vmem>>, vector<32x16xf32>
    %c0_7 = arith.constant 0 : index
    %c0_8 = arith.constant 0 : index
    %7 = vector.load %arg2[%c0_7, %c0_8] : memref<16x128xf32, #tpu.memory_space<vmem>>, vector<16x128xf32>
    %cst_9 = arith.constant dense<0.000000e+00> : vector<32x128xf32>
    %8 = tpu.matmul %6, %7, %cst_9 {dimension_numbers = #tpu.dot_dimension_numbers<[1], [0], [0], [1], [0, 0, 1, 1], [], []>} : vector<32x16xf32>, vector<16x128xf32>, vector<32x128xf32> -> vector<32x128xf32>
    %c0_10 = arith.constant 0 : index
    %c0_11 = arith.constant 0 : index
    %9 = vector.load %arg6[%c0_10, %c0_11] : memref<32x1xf32, #tpu.memory_space<vmem>>, vector<32x1xf32>
    %10 = vector.broadcast %9 : vector<32x1xf32> to vector<32x128xf32>
    %11 = arith.addf %8, %10 : vector<32x128xf32>
    %12 = tpu.concatenate %5, %5 in 1 : vector<32x64xf32>, vector<32x64xf32> -> vector<32x128xf32>
    %13 = arith.mulf %12, %11 : vector<32x128xf32>
    %c0_12 = arith.constant 0 : index
    %c0_13 = arith.constant 0 : index
    %14 = vector.load %arg7[%c0_12, %c0_13] : memref<32x32xf32, #tpu.memory_space<vmem>>, vector<32x32xf32>
    %cst_14 = arith.constant dense<0.000000e+00> : vector<32x128xf32>
    %15 = tpu.matmul %14, %13, %cst_14 {dimension_numbers = #tpu.dot_dimension_numbers<[1], [0], [0], [1], [0, 0, 1, 1], [], []>} : vector<32x32xf32>, vector<32x128xf32>, vector<32x128xf32> -> vector<32x128xf32>
    %c0_15 = arith.constant 0 : index
    %c0_16 = arith.constant 0 : index
    %16 = vector.load %arg8[%c0_15, %c0_16] : memref<32x1xf32, #tpu.memory_space<vmem>>, vector<32x1xf32>
    %17 = vector.broadcast %16 : vector<32x1xf32> to vector<32x128xf32>
    %18 = arith.addf %15, %17 : vector<32x128xf32>
    %c0_17 = arith.constant 0 : index
    %c0_18 = arith.constant 0 : index
    %19 = vector.load %arg9[%c0_17, %c0_18] : memref<32x128xf32, #tpu.memory_space<vmem>>, vector<32x128xf32>
    tpu.vector_store %arg9[%c0_17, %c0_18], %18 {strides = array<i32>} : memref<32x128xf32, #tpu.memory_space<vmem>>, vector<32x128xf32>,
    return
  }
  func.func @transform_0(%arg0: i32) -> (i32, i32) {
    %c0_i32 = arith.constant 0 : i32
    %c0_i32_0 = arith.constant 0 : i32
    %c0_i32_1 = arith.constant 0 : i32
    return %c0_i32, %c0_i32_0 : i32, i32
  }
  func.func @transform_1(%arg0: i32) -> (i32, i32) {
    %c0_i32 = arith.constant 0 : i32
    %c0_i32_0 = arith.constant 0 : i32
    %c0_i32_1 = arith.constant 0 : i32
    return %c0_i32, %c0_i32_0 : i32, i32
  }
  func.func @transform_2(%arg0: i32) -> (i32, i32) {
    %c0_i32 = arith.constant 0 : i32
    %c0_i32_0 = arith.constant 0 : i32
    %c0_i32_1 = arith.constant 0 : i32
    return %c0_i32, %c0_i32_0 : i32, i32
  }
  func.func @transform_3(%arg0: i32) -> (i32, i32) {
    %c0_i32 = arith.constant 0 : i32
    %c0_i32_0 = arith.constant 0 : i32
    %c0_i32_1 = arith.constant 0 : i32
    return %c0_i32, %c0_i32_0 : i32, i32
  }
  func.func @transform_4(%arg0: i32) -> (i32, i32) {
    %c0_i32 = arith.constant 0 : i32
    %c0_i32_0 = arith.constant 0 : i32
    %c0_i32_1 = arith.constant 0 : i32
    return %c0_i32, %c0_i32_0 : i32, i32
  }
  func.func @transform_5(%arg0: i32) -> (i32, i32) {
    %c0_i32 = arith.constant 0 : i32
    %c0_i32_0 = arith.constant 0 : i32
    %c0_i32_1 = arith.constant 0 : i32
    return %c0_i32, %c0_i32_0 : i32, i32
  }
  func.func @transform_6(%arg0: i32) -> (i32, i32) {
    %c0_i32 = arith.constant 0 : i32
    %c0_i32_0 = arith.constant 0 : i32
    %c0_i32_1 = arith.constant 0 : i32
    return %c0_i32, %c0_i32_0 : i32, i32
  }
  func.func @transform_7(%arg0: i32) -> (i32, i32) {
    %c0_i32 = arith.constant 0 : i32
    %c0_i32_0 = arith.constant 0 : i32
    %c0_i32_1 = arith.constant 0 : i32
    return %c0_i32, %c0_i32_0 : i32, i32
  }
  func.func @transform_8(%arg0: i32) -> (i32, i32) {
    %c0_i32 = arith.constant 0 : i32
    %c0_i32_0 = arith.constant 0 : i32
    %c0_i32_1 = arith.constant 0 : i32
    return %c0_i32, %c0_i32_0 : i32, i32
  }
}

</mosaic_0001>

<llo_original>
// kernel: tpu_custom_call.1
$region0: #{tpu_custom_call.1}
  #allocation0 [shape = 'u32[]', space=smem, size = 0x4, offset = 0x4, fixed_abs, tag = 'smem constant byte address 0x4 - core index']
  #allocation1 [shape = 'u32[144,128]{1,0:T(1,128)}', space=vmem, size = 0x12000, scoped, tag = 'internal scratch']
  %s0 = inlined_call_operand.vmem [shape: f32[16,64], index: 0, kind: input, shape index: {}]
  %s1 = inlined_call_operand.vmem [shape: f32[16,128], index: 1, kind: input, shape index: {}]
  %s2 = inlined_call_operand.vmem [shape: f32[32,16], index: 2, kind: input, shape index: {}]
  %s3 = inlined_call_operand.vmem [shape: f32[32,1], index: 3, kind: input, shape index: {}]
  %s4 = inlined_call_operand.vmem [shape: f32[32,16], index: 4, kind: input, shape index: {}]
  %s5 = inlined_call_operand.vmem [shape: f32[32,1], index: 5, kind: input, shape index: {}]
  %s6 = inlined_call_operand.vmem [shape: f32[32,32], index: 6, kind: input, shape index: {}]
  %s7 = inlined_call_operand.vmem [shape: f32[32,1], index: 7, kind: input, shape index: {}]
  %s8 = inlined_call_operand.hbm [shape: f32[32,128], index: 8, kind: output, shape index: {}]
  %s9 = sld [smem:[#allocation0]]
  $region42: #{tpu_custom_call.1} parent=0
    _
  %s11 = ssub.s32 1, %s9
  %s12 = scalar_select 0, %s11, %s9
  $region1: #{tpu_custom_call.1} parent=0
    #allocation2 [shape = 'u8[16384]{0}', space=vmem, size = 0x4000, scoped, tag = 'output window, operand 0, single buffered']
    #allocation3 [shape = 's32[1]{0}', space=sflag, size = 0x4, scoped, tag = 'scoped memory for tpu_custom_call.1']
    %13 = vsyncpa [#allocation3], 0
    // Predicated region
    $region2: #{tpu_custom_call.1} parent=1 // pred_check
      _
    $region3: #{tpu_custom_call.1} parent=1 // pred_check_branch
      %15 = sbr.rel (0) target = $region5
    $region4: #{tpu_custom_call.1} parent=1 // pred_region
      _
    $region5: #{tpu_custom_call.1} parent=1 // pred_fallthru
      _
    // Predicated region
    $region6: #{tpu_custom_call.1} parent=1 // pred_check
      _
    $region7: #{tpu_custom_call.1} parent=1 // pred_check_branch
      %17 = sbr.rel (0) target = $region9
    $region8: #{tpu_custom_call.1} parent=1 // pred_region
      _
    $region9: #{tpu_custom_call.1} parent=1 // pred_fallthru
      _
    // Predicated region
    $region10: #{tpu_custom_call.1} parent=1 // pred_check
      _
    $region11: #{tpu_custom_call.1} parent=1 // pred_check_branch
      %19 = sbr.rel (0) target = $region13
    $region12: #{tpu_custom_call.1} parent=1 // pred_region
      _
    $region13: #{tpu_custom_call.1} parent=1 // pred_fallthru
      _
    // Predicated region
    $region14: #{tpu_custom_call.1} parent=1 // pred_check
      _
    $region15: #{tpu_custom_call.1} parent=1 // pred_check_branch
      %21 = sbr.rel (0) target = $region17
    $region16: #{tpu_custom_call.1} parent=1 // pred_region
      _
    $region17: #{tpu_custom_call.1} parent=1 // pred_fallthru
      _
    // Predicated region
    $region18: #{tpu_custom_call.1} parent=1 // pred_check
      _
    $region19: #{tpu_custom_call.1} parent=1 // pred_check_branch
      %23 = sbr.rel (0) target = $region21
    $region20: #{tpu_custom_call.1} parent=1 // pred_region
      _
    $region21: #{tpu_custom_call.1} parent=1 // pred_fallthru
      _
    // Predicated region
    $region22: #{tpu_custom_call.1} parent=1 // pred_check
      _
    $region23: #{tpu_custom_call.1} parent=1 // pred_check_branch
      %25 = sbr.rel (0) target = $region25
    $region24: #{tpu_custom_call.1} parent=1 // pred_region
      _
    $region25: #{tpu_custom_call.1} parent=1 // pred_fallthru
      _
    // Predicated region
    $region26: #{tpu_custom_call.1} parent=1 // pred_check
      _
    $region27: #{tpu_custom_call.1} parent=1 // pred_check_branch
      %27 = sbr.rel (0) target = $region29
    $region28: #{tpu_custom_call.1} parent=1 // pred_region
      _
    $region29: #{tpu_custom_call.1} parent=1 // pred_fallthru
      _
    // Predicated region
    $region30: #{tpu_custom_call.1} parent=1 // pred_check
      _
    $region31: #{tpu_custom_call.1} parent=1 // pred_check_branch
      %29 = sbr.rel (0) target = $region33
    $region32: #{tpu_custom_call.1} parent=1 // pred_region
      _
    $region33: #{tpu_custom_call.1} parent=1 // pred_fallthru
      _
    %v30 = vld [vmem:[%s2] sm:$0xff]
    %v31 = vld [vmem:[%s2 + $0x8] sm:$0xff]
    %v32 = vld [vmem:[%s2 + $0x10] sm:$0xff]
    %v33 = vld [vmem:[%s2 + $0x18] sm:$0xff]
    %v34 = vld [vmem:[%s0] sm:$0xff]
    %v35 = vld [vmem:[%s0 + $0x8] sm:$0xff]
    %v36 = vld [vmem:[%s3] sm:$0xff]
    %v37 = vld [vmem:[%s3 + $0x8] sm:$0xff]
    %v38 = vld [vmem:[%s3 + $0x10] sm:$0xff]
    %v39 = vld [vmem:[%s3 + $0x18] sm:$0xff]
    %41 = vset.pattern.permute.xlu0 0
    %42 = vperm.xlu0 %41, %v36
    %v43 = vpop.permute.xlu0 %42
    %46 = vset.pattern.permute.xlu0 0
    %47 = vperm.xlu0 %46, %v37
    %v48 = vpop.permute.xlu0 %47
    %51 = vset.pattern.permute.xlu0 0
    %52 = vperm.xlu0 %51, %v38
    %v53 = vpop.permute.xlu0 %52
    %56 = vset.pattern.permute.xlu0 0
    %57 = vperm.xlu0 %56, %v39
    %v58 = vpop.permute.xlu0 %57
    %vm60 = vcmask 130048
    %v62 = vsel %vm60, %v30, 0
    %v65 = vsel %vm60, %v31, 0
    %v68 = vsel %vm60, %v32, 0
    %v71 = vsel %vm60, %v33, 0
    %73 = vmatprep.subr.mxu0 0.0
    %74 = vmatpush1.msra.mxu0 %v34
    %75 = vmatprep.subr.mxu0 0.0
    %76 = vmatpush1.msra.mxu0 %v35
    %77 = vmatprep.subr.mxu0 0.0
    %78 = vmatpush1.msra.mxu0 0.0
    %79 = vmatprep.subr.mxu0 0.0
    %80 = vmatpush1.msra.mxu0 0.0
    %81 = vmatprep.subr.mxu0 0.0
    %82 = vmatpush1.msra.mxu0 0.0
    %83 = vmatprep.subr.mxu0 0.0
    %84 = vmatpush1.msra.mxu0 0.0
    %85 = vmatprep.subr.mxu0 0.0
    %86 = vmatpush1.msra.mxu0 0.0
    %87 = vmatprep.subr.mxu0 0.0
    %88 = vmatpush1.msra.mxu0 0.0
    %89 = vmatprep.subr.mxu0 0.0
    %90 = vmatpush1.msra.mxu0 0.0
    %91 = vmatprep.subr.mxu0 0.0
    %92 = vmatpush1.msra.mxu0 0.0
    %93 = vmatprep.subr.mxu0 0.0
    %94 = vmatpush1.msra.mxu0 0.0
    %95 = vmatprep.subr.mxu0 0.0
    %96 = vmatpush1.msra.mxu0 0.0
    %97 = vmatprep.subr.mxu0 0.0
    %98 = vmatpush1.msra.mxu0 0.0
    %99 = vmatprep.subr.mxu0 0.0
    %100 = vmatpush1.msra.mxu0 0.0
    %101 = vmatprep.subr.mxu0 0.0
    %102 = vmatpush1.msra.mxu0 0.0
    %103 = vmatprep.subr.mxu0 0.0
    %104 = vmatpush1.msra.mxu0 0.0
    %105 = vmatprep.subr.mxu0 0.0
    %106 = vmatpush1.msra.mxu0 0.0
    %107 = vmatprep.subr.mxu0 0.0
    %108 = vmatpush1.msra.mxu0 0.0
    %109 = vmatprep.subr.mxu0 0.0
    %110 = vmatpush1.msra.mxu0 0.0
    %111 = vmatprep.subr.mxu0 0.0
    %112 = vmatpush1.msra.mxu0 0.0
    %113 = vmatprep.subr.mxu0 0.0
    %114 = vmatpush1.msra.mxu0 0.0
    %115 = vmatprep.subr.mxu0 0.0
    %116 = vmatpush1.msra.mxu0 0.0
    %117 = vmatprep.subr.mxu0 0.0
    %118 = vmatpush1.msra.mxu0 0.0
    %119 = vmatprep.subr.mxu0 0.0
    %120 = vmatpush1.msra.mxu0 0.0
    %121 = vmatprep.subr.mxu0 0.0
    %122 = vmatpush1.msra.mxu0 0.0
    %123 = vmatprep.subr.mxu0 0.0
    %124 = vmatpush1.msra.mxu0 0.0
    %125 = vmatprep.subr.mxu0 0.0
    %126 = vmatpush1.msra.mxu0 0.0
    %127 = vmatprep.subr.mxu0 0.0
    %128 = vmatpush1.msra.mxu0 0.0
    %129 = vmatprep.subr.mxu0 0.0
    %130 = vmatpush1.msra.mxu0 0.0
    %131 = vmatprep.subr.mxu0 0.0
    %132 = vmatpush1.msra.mxu0 0.0
    %133 = vmatprep.subr.mxu0 0.0
    %134 = vmatpush1.msra.mxu0 0.0
    %135 = vmatprep.subr.mxu0 0.0
    %136 = vmatpush1.msra.mxu0 0.0
    %137 = vmatprep.mubr.f32.mxu0 0.0
    %138 = vmatmul.mubr.f32.gmra.mrb[0].mxu0 %v62
    %v139 = vpop.f32.mrb[0].mxu0
    %v140 = vadd.f32 %v43, %v139
    %v141 = vpop.f32.mrb[0].mxu0
    %142 = vmatprep.mubr.f32.mxu0 0.0
    %143 = vmatmul.mubr.f32.gmra.mrb[0].mxu0 %v65
    %v144 = vpop.f32.mrb[0].mxu0
    %v145 = vadd.f32 %v48, %v144
    %v146 = vpop.f32.mrb[0].mxu0
    %147 = vmatprep.mubr.f32.mxu0 0.0
    %148 = vmatmul.mubr.f32.gmra.mrb[0].mxu0 %v68
    %v149 = vpop.f32.mrb[0].mxu0
    %v150 = vadd.f32 %v53, %v149
    %v151 = vpop.f32.mrb[0].mxu0
    %152 = vmatprep.mubr.f32.mxu0 0.0
    %153 = vmatmul.mubr.f32.gmra.mrb[0].mxu0 %v71
    %v154 = vpop.f32.mrb[0].mxu0
    %v155 = vadd.f32 %v58, %v154
    %v156 = vpop.f32.mrb[0].mxu0
    %157 = vdwg.mxu0
    %v158 = vld [vmem:[%s4] sm:$0xff]
    %v159 = vld [vmem:[%s4 + $0x8] sm:$0xff]
    %v160 = vld [vmem:[%s4 + $0x10] sm:$0xff]
    %v161 = vld [vmem:[%s4 + $0x18] sm:$0xff]
    %v162 = vld [vmem:[%s1] sm:$0xff]
    %v163 = vld [vmem:[%s1 + $0x8] sm:$0xff]
    %v164 = vld [vmem:[%s5] sm:$0xff]
    %v165 = vld [vmem:[%s5 + $0x8] sm:$0xff]
    %v166 = vld [vmem:[%s5 + $0x10] sm:$0xff]
    %v167 = vld [vmem:[%s5 + $0x18] sm:$0xff]
    %169 = vset.pattern.permute.xlu0 0
    %170 = vperm.xlu0 %169, %v164
    %v171 = vpop.permute.xlu0 %170
    %174 = vset.pattern.permute.xlu0 0
    %175 = vperm.xlu0 %174, %v165
    %v176 = vpop.permute.xlu0 %175
    %179 = vset.pattern.permute.xlu0 0
    %180 = vperm.xlu0 %179, %v166
    %v181 = vpop.permute.xlu0 %180
    %184 = vset.pattern.permute.xlu0 0
    %185 = vperm.xlu0 %184, %v167
    %v186 = vpop.permute.xlu0 %185
    %v189 = vsel %vm60, %v158, 0
    %v192 = vsel %vm60, %v159, 0
    %v195 = vsel %vm60, %v160, 0
    %v198 = vsel %vm60, %v161, 0
    %200 = vmatprep.subr.mxu0 0.0
    %201 = vmatpush1.msra.mxu0 %v162
    %202 = vmatprep.subr.mxu0 0.0
    %203 = vmatpush1.msra.mxu0 %v163
    %204 = vmatprep.subr.mxu0 0.0
    %205 = vmatpush1.msra.mxu0 0.0
    %206 = vmatprep.subr.mxu0 0.0
    %207 = vmatpush1.msra.mxu0 0.0
    %208 = vmatprep.subr.mxu0 0.0
    %209 = vmatpush1.msra.mxu0 0.0
    %210 = vmatprep.subr.mxu0 0.0
    %211 = vmatpush1.msra.mxu0 0.0
    %212 = vmatprep.subr.mxu0 0.0
    %213 = vmatpush1.msra.mxu0 0.0
    %214 = vmatprep.subr.mxu0 0.0
    %215 = vmatpush1.msra.mxu0 0.0
    %216 = vmatprep.subr.mxu0 0.0
    %217 = vmatpush1.msra.mxu0 0.0
    %218 = vmatprep.subr.mxu0 0.0
    %219 = vmatpush1.msra.mxu0 0.0
    %220 = vmatprep.subr.mxu0 0.0
    %221 = vmatpush1.msra.mxu0 0.0
    %222 = vmatprep.subr.mxu0 0.0
    %223 = vmatpush1.msra.mxu0 0.0
    %224 = vmatprep.subr.mxu0 0.0
    %225 = vmatpush1.msra.mxu0 0.0
    %226 = vmatprep.subr.mxu0 0.0
    %227 = vmatpush1.msra.mxu0 0.0
    %228 = vmatprep.subr.mxu0 0.0
    %229 = vmatpush1.msra.mxu0 0.0
    %230 = vmatprep.subr.mxu0 0.0
    %231 = vmatpush1.msra.mxu0 0.0
    %232 = vmatprep.subr.mxu0 0.0
    %233 = vmatpush1.msra.mxu0 0.0
    %234 = vmatprep.subr.mxu0 0.0
    %235 = vmatpush1.msra.mxu0 0.0
    %236 = vmatprep.subr.mxu0 0.0
    %237 = vmatpush1.msra.mxu0 0.0
    %238 = vmatprep.subr.mxu0 0.0
    %239 = vmatpush1.msra.mxu0 0.0
    %240 = vmatprep.subr.mxu0 0.0
    %241 = vmatpush1.msra.mxu0 0.0
    %242 = vmatprep.subr.mxu0 0.0
    %243 = vmatpush1.msra.mxu0 0.0
    %244 = vmatprep.subr.mxu0 0.0
    %245 = vmatpush1.msra.mxu0 0.0
    %246 = vmatprep.subr.mxu0 0.0
    %247 = vmatpush1.msra.mxu0 0.0
    %248 = vmatprep.subr.mxu0 0.0
    %249 = vmatpush1.msra.mxu0 0.0
    %250 = vmatprep.subr.mxu0 0.0
    %251 = vmatpush1.msra.mxu0 0.0
    %252 = vmatprep.subr.mxu0 0.0
    %253 = vmatpush1.msra.mxu0 0.0
    %254 = vmatprep.subr.mxu0 0.0
    %255 = vmatpush1.msra.mxu0 0.0
    %256 = vmatprep.subr.mxu0 0.0
    %257 = vmatpush1.msra.mxu0 0.0
    %258 = vmatprep.subr.mxu0 0.0
    %259 = vmatpush1.msra.mxu0 0.0
    %260 = vmatprep.subr.mxu0 0.0
    %261 = vmatpush1.msra.mxu0 0.0
    %262 = vmatprep.subr.mxu0 0.0
    %263 = vmatpush1.msra.mxu0 0.0
    %264 = vmatprep.mubr.f32.mxu0 0.0
    %265 = vmatmul.mubr.f32.gmra.mrb[0].mxu0 %v189
    %v266 = vpop.f32.mrb[0].mxu0
    %v267 = vadd.f32 %v171, %v266
    %v268 = vpop.f32.mrb[0].mxu0
    %269 = vmatprep.mubr.f32.mxu0 0.0
    %270 = vmatmul.mubr.f32.gmra.mrb[0].mxu0 %v192
    %v271 = vpop.f32.mrb[0].mxu0
    %v272 = vadd.f32 %v176, %v271
    %v273 = vpop.f32.mrb[0].mxu0
    %274 = vmatprep.mubr.f32.mxu0 0.0
    %275 = vmatmul.mubr.f32.gmra.mrb[0].mxu0 %v195
    %v276 = vpop.f32.mrb[0].mxu0
    %v277 = vadd.f32 %v181, %v276
    %v278 = vpop.f32.mrb[0].mxu0
    %279 = vmatprep.mubr.f32.mxu0 0.0
    %280 = vmatmul.mubr.f32.gmra.mrb[0].mxu0 %v198
    %v281 = vpop.f32.mrb[0].mxu0
    %v282 = vadd.f32 %v186, %v281
    %v283 = vpop.f32.mrb[0].mxu0
    %284 = vdwg.mxu0
    %289 = vrot.lane.b32.xlu0 %v140, 64
    %v290 = vpop.permute.xlu0 %289
    %291 = vrot.lane.b32.xlu0 %v145, 64
    %v292 = vpop.permute.xlu0 %291
    %293 = vrot.lane.b32.xlu0 %v150, 64
    %v294 = vpop.permute.xlu0 %293
    %295 = vrot.lane.b32.xlu0 %v155, 64
    %v296 = vpop.permute.xlu0 %295
    %vm301 = vcmask 523264
    %v302 = vsel %vm301, %v140, %v290
    %v303 = vsel %vm301, %v145, %v292
    %v304 = vsel %vm301, %v150, %v294
    %v305 = vsel %vm301, %v155, %v296
    %v306 = vmul.f32 %v302, %v267
    %v307 = vmul.f32 %v303, %v272
    %v308 = vmul.f32 %v304, %v277
    %v309 = vmul.f32 %v305, %v282
    %v310 = vld [vmem:[%s6] sm:$0xff]
    %v311 = vld [vmem:[%s6 + $0x8] sm:$0xff]
    %v312 = vld [vmem:[%s6 + $0x10] sm:$0xff]
    %v313 = vld [vmem:[%s6 + $0x18] sm:$0xff]
    %v314 = vld [vmem:[%s7] sm:$0xff]
    %v315 = vld [vmem:[%s7 + $0x8] sm:$0xff]
    %v316 = vld [vmem:[%s7 + $0x10] sm:$0xff]
    %v317 = vld [vmem:[%s7 + $0x18] sm:$0xff]
    %319 = vset.pattern.permute.xlu0 0
    %320 = vperm.xlu0 %319, %v314
    %v321 = vpop.permute.xlu0 %320
    %324 = vset.pattern.permute.xlu0 0
    %325 = vperm.xlu0 %324, %v315
    %v326 = vpop.permute.xlu0 %325
    %329 = vset.pattern.permute.xlu0 0
    %330 = vperm.xlu0 %329, %v316
    %v331 = vpop.permute.xlu0 %330
    %334 = vset.pattern.permute.xlu0 0
    %335 = vperm.xlu0 %334, %v317
    %v336 = vpop.permute.xlu0 %335
    %vm338 = vcmask 261120
    %v340 = vsel %vm338, %v310, 0
    %v343 = vsel %vm338, %v311, 0
    %v346 = vsel %vm338, %v312, 0
    %v349 = vsel %vm338, %v313, 0
    %351 = vmatprep.subr.mxu0 0.0
    %352 = vmatpush1.msra.mxu0 %v306
    %353 = vmatprep.subr.mxu0 0.0
    %354 = vmatpush1.msra.mxu0 %v307
    %355 = vmatprep.subr.mxu0 0.0
    %356 = vmatpush1.msra.mxu0 %v308
    %357 = vmatprep.subr.mxu0 0.0
    %358 = vmatpush1.msra.mxu0 %v309
    %359 = vmatprep.subr.mxu0 0.0
    %360 = vmatpush1.msra.mxu0 0.0
    %361 = vmatprep.subr.mxu0 0.0
    %362 = vmatpush1.msra.mxu0 0.0
    %363 = vmatprep.subr.mxu0 0.0
    %364 = vmatpush1.msra.mxu0 0.0
    %365 = vmatprep.subr.mxu0 0.0
    %366 = vmatpush1.msra.mxu0 0.0
    %367 = vmatprep.subr.mxu0 0.0
    %368 = vmatpush1.msra.mxu0 0.0
    %369 = vmatprep.subr.mxu0 0.0
    %370 = vmatpush1.msra.mxu0 0.0
    %371 = vmatprep.subr.mxu0 0.0
    %372 = vmatpush1.msra.mxu0 0.0
    %373 = vmatprep.subr.mxu0 0.0
    %374 = vmatpush1.msra.mxu0 0.0
    %375 = vmatprep.subr.mxu0 0.0
    %376 = vmatpush1.msra.mxu0 0.0
    %377 = vmatprep.subr.mxu0 0.0
    %378 = vmatpush1.msra.mxu0 0.0
    %379 = vmatprep.subr.mxu0 0.0
    %380 = vmatpush1.msra.mxu0 0.0
    %381 = vmatprep.subr.mxu0 0.0
    %382 = vmatpush1.msra.mxu0 0.0
    %383 = vmatprep.subr.mxu0 0.0
    %384 = vmatpush1.msra.mxu0 0.0
    %385 = vmatprep.subr.mxu0 0.0
    %386 = vmatpush1.msra.mxu0 0.0
    %387 = vmatprep.subr.mxu0 0.0
    %388 = vmatpush1.msra.mxu0 0.0
    %389 = vmatprep.subr.mxu0 0.0
    %390 = vmatpush1.msra.mxu0 0.0
    %391 = vmatprep.subr.mxu0 0.0
    %392 = vmatpush1.msra.mxu0 0.0
    %393 = vmatprep.subr.mxu0 0.0
    %394 = vmatpush1.msra.mxu0 0.0
    %395 = vmatprep.subr.mxu0 0.0
    %396 = vmatpush1.msra.mxu0 0.0
    %397 = vmatprep.subr.mxu0 0.0
    %398 = vmatpush1.msra.mxu0 0.0
    %399 = vmatprep.subr.mxu0 0.0
    %400 = vmatpush1.msra.mxu0 0.0
    %401 = vmatprep.subr.mxu0 0.0
    %402 = vmatpush1.msra.mxu0 0.0
    %403 = vmatprep.subr.mxu0 0.0
    %404 = vmatpush1.msra.mxu0 0.0
    %405 = vmatprep.subr.mxu0 0.0
    %406 = vmatpush1.msra.mxu0 0.0
    %407 = vmatprep.subr.mxu0 0.0
    %408 = vmatpush1.msra.mxu0 0.0
    %409 = vmatprep.subr.mxu0 0.0
    %410 = vmatpush1.msra.mxu0 0.0
    %411 = vmatprep.subr.mxu0 0.0
    %412 = vmatpush1.msra.mxu0 0.0
    %413 = vmatprep.subr.mxu0 0.0
    %414 = vmatpush1.msra.mxu0 0.0
    %415 = vmatprep.mubr.f32.mxu0 0.0
    %416 = vmatmul.mubr.f32.gmra.mrb[0].mxu0 %v340
    %v417 = vpop.f32.mrb[0].mxu0
    %v418 = vadd.f32 %v321, %v417
    %v419 = vpop.f32.mrb[0].mxu0
    %420 = vmatprep.mubr.f32.mxu0 0.0
    %421 = vmatmul.mubr.f32.gmra.mrb[0].mxu0 %v343
    %v422 = vpop.f32.mrb[0].mxu0
    %v423 = vadd.f32 %v326, %v422
    %v424 = vpop.f32.mrb[0].mxu0
    %425 = vmatprep.mubr.f32.mxu0 0.0
    %426 = vmatmul.mubr.f32.gmra.mrb[0].mxu0 %v346
    %v427 = vpop.f32.mrb[0].mxu0
    %v428 = vadd.f32 %v331, %v427
    %v429 = vpop.f32.mrb[0].mxu0
    %430 = vmatprep.mubr.f32.mxu0 0.0
    %431 = vmatmul.mubr.f32.gmra.mrb[0].mxu0 %v349
    %v432 = vpop.f32.mrb[0].mxu0
    %v433 = vadd.f32 %v336, %v432
    %v434 = vpop.f32.mrb[0].mxu0
    %435 = vdwg.mxu0
    %436 = vst [vmem:[#allocation2] sm:$0xff] %v418
    %437 = vst [vmem:[#allocation2 + $0x8] sm:$0xff] %v423
    %438 = vst [vmem:[#allocation2 + $0x10] sm:$0xff] %v428
    %439 = vst [vmem:[#allocation2 + $0x18] sm:$0xff] %v433
    // Predicated region
    $region34: #{tpu_custom_call.1} parent=1 // pred_check
      _
    $region35: #{tpu_custom_call.1} parent=1 // pred_check_branch
      %441 = sbr.rel (0) target = $region37
    $region36: #{tpu_custom_call.1} parent=1 // pred_region
      %s443 = ssub.s32 512, 512
      %444 = vsyncadd [#allocation3], %s443
      %s445 = sshll.u32 [#allocation2], 4
      %s446 = int_to_ptr.vmem [resolvable:$true] %s445
      %451 = dma.vmem_to_hbm [thread:$0]  %s446, 512, %s8, [#allocation3], 128, 128, 8
    $region37: #{tpu_custom_call.1} parent=1 // pred_fallthru
      _
    // Predicated region
    $region38: #{tpu_custom_call.1} parent=1 // pred_check
      _
    $region39: #{tpu_custom_call.1} parent=1 // pred_check_branch
      %453 = sbr.rel (0) target = $region41
    $region40: #{tpu_custom_call.1} parent=1 // pred_region
      %454 = dma.done [#allocation3], 512
    $region41: #{tpu_custom_call.1} parent=1 // pred_fallthru
      _
    %455 = vsyncpa [#allocation3], 1

</llo_original>
